<compile_context>
chip_gen: v7x
topology: tpu7x:2x2x1
jax: 0.10.0
libtpu: 0.0.40
codegen_flags: <defaults>
</compile_context>

<pallas_src>
import functools

import jax
import jax.numpy as jnp
from jax.experimental import pallas as pl
from jax.experimental.pallas import tpu as pltpu

EPS = 1e-5
NEG_SLOPE = 0.01
NEG_INF = -1e30


def _round_up(x, m):
    return (x + m - 1) // m * m


def _leaky_relu(x):
    return jnp.where(x > 0, x, NEG_SLOPE * x)


def ffnetwork_kernel(output_dim, x_ref, addmask_ref,
                     w1_ref, w2_ref, w3_ref, wh_ref, b123_ref, bh_ref, out_ref):
    """One batch tile. Weights arrive pre-folded (eval BN), pre-fused (policy+value
    head) and possibly bf16; biases stay f32. addmask_ref already holds the additive
    logit mask (0 = keep, -1e30 = drop) including value/padding lanes, so a single
    softmax yields the masked, renormalized policy."""
    cdt = w1_ref.dtype                         # MXU feed dtype (bf16 in deployment)
    b = b123_ref[...]                          # (3, hidden) f32

    # Three fused Linear(+folded BN) -> LeakyReLU blocks; Dropout = identity (eval).
    # MXU in `cdt`, f32 accumulation; VPU/EUP epilogue stays f32 (no bf16 VPU on v5e).
    h = _leaky_relu(jnp.dot(x_ref[...].astype(cdt), w1_ref[...],
                            preferred_element_type=jnp.float32) + b[0:1, :])
    h = _leaky_relu(jnp.dot(h.astype(cdt), w2_ref[...],
                            preferred_element_type=jnp.float32) + b[1:2, :])
    h = _leaky_relu(jnp.dot(h.astype(cdt), w3_ref[...],
                            preferred_element_type=jnp.float32) + b[2:3, :])

    # Fused heads: columns [0, out) = policy logits, column `out` = state value,
    # remaining lanes = padding (masked out of the softmax).
    head = jnp.dot(h.astype(cdt), wh_ref[...],
                   preferred_element_type=jnp.float32) + bh_ref[...]

    # Masked softmax: additive masking == softmax -> *(1-mask) -> renormalize for a
    # binary mask. Exact reciprocal so probabilities sum to 1 for downstream
    # Categorical sampling / log-prob math.
    z = head + addmask_ref[...]
    z = z - jnp.max(z, axis=-1, keepdims=True)
    e = jnp.exp(z)
    probs = e * pl.reciprocal(jnp.sum(e, axis=-1, keepdims=True))

    # Lane-dense (multiple-of-128) output slab: [probs | value | ~zeros].
    col = jax.lax.broadcasted_iota(jnp.int32, head.shape, 1)
    out_ref[...] = jnp.where(col == output_dim, head, probs)


def prepare_params(params, *, weights_dtype=jnp.bfloat16):
    """ONE-TIME prep (call once, reuse every env step):
    fold eval-mode BatchNorm into the Linear weights/biases, fuse the policy and
    value heads into a single [hidden, out+1] matmul padded to 128 lanes, and cast
    the matmul weights to `weights_dtype` (bf16 for the MXU). Biases stay f32."""
    def fold(w, bias, g, be, rm, rv):
        scale = g * jax.lax.rsqrt(rv + EPS)            # (1, hidden)
        return w * scale, (bias - rm) * scale + be

    w1, b1 = fold(params["w1"], params["b1"], params["g1"], params["be1"],
                  params["rm1"], params["rv1"])
    w2, b2 = fold(params["w2"], params["b2"], params["g2"], params["be2"],
                  params["rm2"], params["rv2"])
    w3, b3 = fold(params["w3"], params["b3"], params["g3"], params["be3"],
                  params["rm3"], params["rv3"])

    output_dim = params["wo"].shape[1]
    head_p = _round_up(output_dim + 1, 128)            # lane-dense fused head width

    wh = jnp.concatenate([params["wo"], params["wv"]], axis=1)   # [hidden, out+1]
    bh = jnp.concatenate([params["bo"], params["bv"]], axis=1)   # [1, out+1]
    wh = jnp.pad(wh, ((0, 0), (0, head_p - (output_dim + 1))))
    bh = jnp.pad(bh, ((0, 0), (0, head_p - (output_dim + 1))))

    return {
        "w1": w1.astype(weights_dtype),
        "w2": w2.astype(weights_dtype),
        "w3": w3.astype(weights_dtype),
        "wh": wh.astype(weights_dtype),
        "b123": jnp.concatenate([b1, b2, b3], axis=0).astype(jnp.float32),  # (3, hid)
        "bh": bh.astype(jnp.float32),                                       # (1, head_p)
    }


def _pick_batch_block(B):
    """Batch tile: 8-row granularity; >= 2 grid steps once B allows it so
    dimension_semantics=('parallel',) shards across both v7x TensorCores;
    rounded to 128 and capped at 512 for large B (MXU-friendly M tiles)."""
    b8 = _round_up(B, 8)
    if b8 <= 8:
        return 8
    half = b8 // 2
    if half >= 128:
        return min(_round_up(half, 128), 512)
    return _round_up(half, 8)


def ffnetwork_forward(x, mask, prep, *, batch_block=None, weight_buffer_count=None):
    """x: [B, input_dim] f32, mask: [B, output_dim] f32 (1 = invalid action),
    prep: output of prepare_params(). Returns (norm_prob [B, out], value [B, 1])."""
    B, input_dim = x.shape
    output_dim = mask.shape[1]
    hidden = prep["w1"].shape[1]
    head_p = prep["wh"].shape[1]

    if batch_block is None:
        batch_block = _pick_batch_block(B)
    B_P = _round_up(B, batch_block)

    xp = x.astype(jnp.float32)
    if B_P != B:
        xp = jnp.pad(xp, ((0, B_P - B), (0, 0)))
    # Additive mask slab built on the host: 0 = keep, -1e30 = drop. Value column,
    # lane padding and batch padding are all dropped from the softmax.
    addmask = jnp.pad(mask.astype(jnp.float32) * NEG_INF,
                      ((0, B_P - B), (0, head_p - output_dim)),
                      constant_values=NEG_INF)

    grid = (B_P // batch_block,)

    def batch_spec(cols):
        return pl.BlockSpec((batch_block, cols), lambda i: (i, 0))

    def const_spec(shape):
        # Same block every grid step -> weights stay VMEM-resident across iterations.
        # weight_buffer_count=1 (pl.Buffered) drops the pointless double-buffering of
        # these constant blocks (useful on v7x's 64 MiB VMEM with large hidden dims).
        if weight_buffer_count is None:
            return pl.BlockSpec(shape, lambda i: (0,) * len(shape))
        return pl.BlockSpec(shape, lambda i: (0,) * len(shape),
                            pipeline_mode=pl.Buffered(weight_buffer_count))

    # Explicit VMEM budget: resident weights (double-buffered by default) + per-block
    # I/O + activation temporaries, floored at 32 MiB (above v5e's 16 MiB default
    # scoped limit, within every chip's default/physical budget for these sizes).
    wbytes = jnp.dtype(prep["w1"].dtype).itemsize
    weight_bytes = ((input_dim * hidden + 2 * hidden * hidden + hidden * head_p) * wbytes
                    + (3 * hidden + head_p) * 4)
    io_bytes = batch_block * (input_dim + 2 * head_p) * 4
    act_bytes = batch_block * (3 * hidden + 2 * head_p) * 4
    est = 2 * (weight_bytes + io_bytes) + act_bytes
    vmem_limit = int(max(32 << 20, min(2 * est + (2 << 20), 112 << 20)))
    # TODO(synk): if hidden grows past what fits resident (esp. v7x 64 MiB), add a K
    #             ("arbitrary") grid axis with a VMEM accumulator instead.

    out_slab = pl.pallas_call(
        functools.partial(ffnetwork_kernel, output_dim),
        out_shape=jax.ShapeDtypeStruct((B_P, head_p), jnp.float32),
        grid=grid,
        in_specs=[
            batch_spec(input_dim),                       # x
            batch_spec(head_p),                          # additive mask slab
            const_spec((input_dim, hidden)),             # layer1 weight (BN folded)
            const_spec((hidden, hidden)),                # layer2 weight
            const_spec((hidden, hidden)),                # layer3 weight
            const_spec((hidden, head_p)),                # fused policy+value head
            const_spec((3, hidden)),                     # biases for layers 1..3
            const_spec((1, head_p)),                     # head bias
        ],
        out_specs=pl.BlockSpec((batch_block, head_p), lambda i: (i, 0)),
        compiler_params=pltpu.CompilerParams(
            dimension_semantics=("parallel",),
            vmem_limit_bytes=vmem_limit),
    )(xp, addmask, prep["w1"], prep["w2"], prep["w3"], prep["wh"],
      prep["b123"], prep["bh"])

    norm_prob = out_slab[:B, :output_dim]
    value = out_slab[:B, output_dim:output_dim + 1]
    return norm_prob, value


def init_params(key, input_dim, hidden_dim, output_dim):
    """Kaiming-uniform (fan_in, relu) Linear weights, zero biases.
    BatchNorm params perturbed from their PyTorch defaults so BN folding is
    actually exercised by the correctness check."""
    def kaiming(k, fan_in, fan_out):
        bound = jnp.sqrt(6.0 / fan_in)   # gain=sqrt(2), bound=gain*sqrt(3/fan_in)
        # stored as [in, out] (transposed vs. PyTorch's [out, in]) for x @ W
        return jax.random.uniform(k, (fan_in, fan_out), jnp.float32, -bound, bound)

    ks = jax.random.split(key, 9)
    p = {}
    p["w1"] = kaiming(ks[0], input_dim, hidden_dim)
    p["w2"] = kaiming(ks[1], hidden_dim, hidden_dim)
    p["w3"] = kaiming(ks[2], hidden_dim, hidden_dim)
    p["wo"] = kaiming(ks[3], hidden_dim, output_dim)
    p["wv"] = kaiming(ks[4], hidden_dim, 1)
    p["b1"] = jnp.zeros((1, hidden_dim), jnp.float32)
    p["b2"] = jnp.zeros((1, hidden_dim), jnp.float32)
    p["b3"] = jnp.zeros((1, hidden_dim), jnp.float32)
    p["bo"] = jnp.zeros((1, output_dim), jnp.float32)
    p["bv"] = jnp.zeros((1, 1), jnp.float32)
    for idx, i in enumerate((1, 2, 3)):
        kk = jax.random.split(ks[5 + idx], 4)
        p[f"g{i}"] = 1.0 + 0.1 * jax.random.normal(kk[0], (1, hidden_dim), jnp.float32)
        p[f"be{i}"] = 0.1 * jax.random.normal(kk[1], (1, hidden_dim), jnp.float32)
        p[f"rm{i}"] = 0.1 * jax.random.normal(kk[2], (1, hidden_dim), jnp.float32)
        p[f"rv{i}"] = 1.0 + 0.1 * jax.random.uniform(kk[3], (1, hidden_dim), jnp.float32)
    return p


def reference_forward(x, mask, p):
    """Pure-JAX reference of the original (unfolded) math for the sanity check."""
    def block(h, w, b, g, be, rm, rv):
        h = h @ w + b
        h = (h - rm) * jax.lax.rsqrt(rv + EPS) * g + be
        return jnp.where(h > 0, h, NEG_SLOPE * h)

    h = block(x, p["w1"], p["b1"], p["g1"], p["be1"], p["rm1"], p["rv1"])
    h = block(h, p["w2"], p["b2"], p["g2"], p["be2"], p["rm2"], p["rv2"])
    h = block(h, p["w3"], p["b3"], p["g3"], p["be3"], p["rm3"], p["rv3"])
    val = h @ p["wv"] + p["bv"]
    logits = h @ p["wo"] + p["bo"]
    probs = jax.nn.softmax(logits, axis=-1)
    masked = probs * (1.0 - mask)
    norm = masked / jnp.sum(masked, axis=1, keepdims=True)
    return norm, val


if __name__ == "__main__":
    # Small shapes consistent with the module: state.view(B, -1) -> [B, input_dim]
    B, INPUT_DIM, HIDDEN_DIM, OUTPUT_DIM = 8, 32, 32, 16

    key = jax.random.PRNGKey(0)
    k_param, k_x, k_mask = jax.random.split(key, 3)

    params = init_params(k_param, INPUT_DIM, HIDDEN_DIM, OUTPUT_DIM)
    x = jax.random.normal(k_x, (B, INPUT_DIM), jnp.float32)
    # mask: 1 = forbidden action (as produced by env.generate_mask()); keep some valid
    mask = (jax.random.uniform(k_mask, (B, OUTPUT_DIM)) < 0.3).astype(jnp.float32)
    mask = mask.at[:, 0].set(0.0)  # ensure at least one valid action per row
    # NOTE: a row with ALL actions masked is a divide-by-zero in the PyTorch
    # reference; the kernel returns a softmax over the masked logits for such rows.

    ref_prob, ref_val = reference_forward(x, mask, params)
    fwd = jax.jit(ffnetwork_forward)

    # 1) Strict f32 path: validates BN folding, head fusion, masked softmax exactly.
    prep_f32 = prepare_params(params, weights_dtype=jnp.float32)
    p32, v32 = jax.block_until_ready(fwd(x, mask, prep_f32))
    assert jnp.allclose(p32, ref_prob, atol=1e-3, rtol=1e-3), "f32 prob mismatch"
    assert jnp.allclose(v32, ref_val, atol=1e-3, rtol=1e-3), "f32 value mismatch"
    assert jnp.allclose(jnp.sum(p32, axis=-1), 1.0, atol=1e-5), "f32 probs not normalized"

    # 2) Deployment path: bf16 MXU feeds (perf-review item); looser tolerance is
    #    purely bf16 weight/activation rounding.
    prep_bf16 = prepare_params(params)          # weights_dtype=jnp.bfloat16
    p16, v16 = jax.block_until_ready(fwd(x, mask, prep_bf16))
    assert jnp.allclose(p16, ref_prob, atol=5e-2, rtol=5e-2), "bf16 prob mismatch"
    assert jnp.allclose(v16, ref_val, atol=5e-2, rtol=5e-2), "bf16 value mismatch"
    assert jnp.allclose(jnp.sum(p16, axis=-1), 1.0, atol=1e-5), "bf16 probs not normalized"

    print("KERNEL_OK")
</pallas_src>

<mosaic_0001>
module attributes {stable_mosaic.version = 11 : i64} {
  func.func @ffnetwork_kernel(%arg0: i32, %arg1: memref<8x32xf32, #tpu.memory_space<vmem>>, %arg2: memref<8x128xf32, #tpu.memory_space<vmem>>, %arg3: memref<32x32xf32, #tpu.memory_space<vmem>>, %arg4: memref<32x32xf32, #tpu.memory_space<vmem>>, %arg5: memref<32x32xf32, #tpu.memory_space<vmem>>, %arg6: memref<32x128xf32, #tpu.memory_space<vmem>>, %arg7: memref<3x32xf32, #tpu.memory_space<vmem>>, %arg8: memref<1x128xf32, #tpu.memory_space<vmem>>, %arg9: memref<8x128xf32, #tpu.memory_space<vmem>>) attributes {dimension_semantics = [#tpu.dimension_semantics<parallel>], iteration_bounds = array<i64: 1>, scalar_prefetch = 0 : i64, scratch_operands = 0 : i64, tpu.core_type = #tpu.core_type<tc>, window_params = [{transform_indices = @transform_0, window_bounds = array<i64: 8, 32>}, {transform_indices = @transform_1, window_bounds = array<i64: 8, 128>}, {pipeline_mode = #tpu.pipeline_mode<synchronous>, transform_indices = @transform_2, window_bounds = array<i64: 32, 32>}, {pipeline_mode = #tpu.pipeline_mode<synchronous>, transform_indices = @transform_3, window_bounds = array<i64: 32, 32>}, {pipeline_mode = #tpu.pipeline_mode<synchronous>, transform_indices = @transform_4, window_bounds = array<i64: 32, 32>}, {pipeline_mode = #tpu.pipeline_mode<synchronous>, transform_indices = @transform_5, window_bounds = array<i64: 32, 128>}, {pipeline_mode = #tpu.pipeline_mode<synchronous>, transform_indices = @transform_6, window_bounds = array<i64: 3, 32>}, {pipeline_mode = #tpu.pipeline_mode<synchronous>, transform_indices = @transform_7, window_bounds = array<i64: 1, 128>}, {transform_indices = @transform_8, window_bounds = array<i64: 8, 128>}]} {
    %c0 = arith.constant 0 : index
    %c0_0 = arith.constant 0 : index
    %0 = vector.load %arg7[%c0, %c0_0] : memref<3x32xf32, #tpu.memory_space<vmem>>, vector<3x32xf32>
    %c0_1 = arith.constant 0 : index
    %c0_2 = arith.constant 0 : index
    %1 = vector.load %arg1[%c0_1, %c0_2] : memref<8x32xf32, #tpu.memory_space<vmem>>, vector<8x32xf32>
    %c0_3 = arith.constant 0 : index
    %c0_4 = arith.constant 0 : index
    %2 = vector.load %arg3[%c0_3, %c0_4] : memref<32x32xf32, #tpu.memory_space<vmem>>, vector<32x32xf32>
    %cst = arith.constant dense<0.000000e+00> : vector<8x32xf32>
    %3 = tpu.matmul %1, %2, %cst {dimension_numbers = #tpu.dot_dimension_numbers<[1], [0], [0], [1], [0, 0, 1, 1], [], []>} : vector<8x32xf32>, vector<32x32xf32>, vector<8x32xf32> -> vector<8x32xf32>
    %4 = vector.extract_strided_slice %0 {offsets = [0, 0], sizes = [1, 32], strides = [1, 1]} : vector<3x32xf32> to vector<1x32xf32>
    %5 = vector.broadcast %4 : vector<1x32xf32> to vector<8x32xf32>
    %6 = arith.addf %3, %5 : vector<8x32xf32>
    %cst_5 = arith.constant 0.000000e+00 : f32
    %7 = vector.broadcast %cst_5 : f32 to vector<8x32xf32>
    %8 = arith.cmpf ogt, %6, %7 : vector<8x32xf32>
    %cst_6 = arith.constant 0.00999999977 : f32
    %9 = vector.broadcast %cst_6 : f32 to vector<8x32xf32>
    %10 = arith.mulf %9, %6 : vector<8x32xf32>
    %11 = arith.select %8, %6, %10 : vector<8x32xi1>, vector<8x32xf32>
    %c0_7 = arith.constant 0 : index
    %c0_8 = arith.constant 0 : index
    %12 = vector.load %arg4[%c0_7, %c0_8] : memref<32x32xf32, #tpu.memory_space<vmem>>, vector<32x32xf32>
    %cst_9 = arith.constant dense<0.000000e+00> : vector<8x32xf32>
    %13 = tpu.matmul %11, %12, %cst_9 {dimension_numbers = #tpu.dot_dimension_numbers<[1], [0], [0], [1], [0, 0, 1, 1], [], []>} : vector<8x32xf32>, vector<32x32xf32>, vector<8x32xf32> -> vector<8x32xf32>
    %14 = vector.extract_strided_slice %0 {offsets = [1, 0], sizes = [1, 32], strides = [1, 1]} : vector<3x32xf32> to vector<1x32xf32>
    %15 = vector.broadcast %14 : vector<1x32xf32> to vector<8x32xf32>
    %16 = arith.addf %13, %15 : vector<8x32xf32>
    %cst_10 = arith.constant 0.000000e+00 : f32
    %17 = vector.broadcast %cst_10 : f32 to vector<8x32xf32>
    %18 = arith.cmpf ogt, %16, %17 : vector<8x32xf32>
    %cst_11 = arith.constant 0.00999999977 : f32
    %19 = vector.broadcast %cst_11 : f32 to vector<8x32xf32>
    %20 = arith.mulf %19, %16 : vector<8x32xf32>
    %21 = arith.select %18, %16, %20 : vector<8x32xi1>, vector<8x32xf32>
    %c0_12 = arith.constant 0 : index
    %c0_13 = arith.constant 0 : index
    %22 = vector.load %arg5[%c0_12, %c0_13] : memref<32x32xf32, #tpu.memory_space<vmem>>, vector<32x32xf32>
    %cst_14 = arith.constant dense<0.000000e+00> : vector<8x32xf32>
    %23 = tpu.matmul %21, %22, %cst_14 {dimension_numbers = #tpu.dot_dimension_numbers<[1], [0], [0], [1], [0, 0, 1, 1], [], []>} : vector<8x32xf32>, vector<32x32xf32>, vector<8x32xf32> -> vector<8x32xf32>
    %24 = vector.extract_strided_slice %0 {offsets = [2, 0], sizes = [1, 32], strides = [1, 1]} : vector<3x32xf32> to vector<1x32xf32>
    %25 = vector.broadcast %24 : vector<1x32xf32> to vector<8x32xf32>
    %26 = arith.addf %23, %25 : vector<8x32xf32>
    %cst_15 = arith.constant 0.000000e+00 : f32
    %27 = vector.broadcast %cst_15 : f32 to vector<8x32xf32>
    %28 = arith.cmpf ogt, %26, %27 : vector<8x32xf32>
    %cst_16 = arith.constant 0.00999999977 : f32
    %29 = vector.broadcast %cst_16 : f32 to vector<8x32xf32>
    %30 = arith.mulf %29, %26 : vector<8x32xf32>
    %31 = arith.select %28, %26, %30 : vector<8x32xi1>, vector<8x32xf32>
    %c0_17 = arith.constant 0 : index
    %c0_18 = arith.constant 0 : index
    %32 = vector.load %arg6[%c0_17, %c0_18] : memref<32x128xf32, #tpu.memory_space<vmem>>, vector<32x128xf32>
    %cst_19 = arith.constant dense<0.000000e+00> : vector<8x128xf32>
    %33 = tpu.matmul %31, %32, %cst_19 {dimension_numbers = #tpu.dot_dimension_numbers<[1], [0], [0], [1], [0, 0, 1, 1], [], []>} : vector<8x32xf32>, vector<32x128xf32>, vector<8x128xf32> -> vector<8x128xf32>
    %c0_20 = arith.constant 0 : index
    %c0_21 = arith.constant 0 : index
    %34 = vector.load %arg8[%c0_20, %c0_21] : memref<1x128xf32, #tpu.memory_space<vmem>>, vector<1x128xf32>
    %35 = vector.broadcast %34 : vector<1x128xf32> to vector<8x128xf32>
    %36 = arith.addf %33, %35 : vector<8x128xf32>
    %c0_22 = arith.constant 0 : index
    %c0_23 = arith.constant 0 : index
    %37 = vector.load %arg2[%c0_22, %c0_23] : memref<8x128xf32, #tpu.memory_space<vmem>>, vector<8x128xf32>
    %38 = arith.addf %36, %37 : vector<8x128xf32>
    %cst_24 = arith.constant dense<0xFF800000> : vector<8xf32>
    %39 = vector.multi_reduction <maximumf>, %38, %cst_24 [1] : vector<8x128xf32> to vector<8xf32>
    %40 = vector.shape_cast %39 : vector<8xf32> to vector<8x1xf32>
    %41 = vector.broadcast %40 : vector<8x1xf32> to vector<8x128xf32>
    %42 = arith.subf %38, %41 : vector<8x128xf32>
    %43 = math.exp %42 : vector<8x128xf32>
    %cst_25 = arith.constant dense<0.000000e+00> : vector<8xf32>
    %44 = vector.multi_reduction <add>, %43, %cst_25 [1] : vector<8x128xf32> to vector<8xf32>
    %45 = vector.shape_cast %44 : vector<8xf32> to vector<8x1xf32>
    %46 = tpu.reciprocal %45 : vector<8x1xf32> -> vector<8x1xf32>
    %47 = vector.broadcast %46 : vector<8x1xf32> to vector<8x128xf32>
    %48 = arith.mulf %43, %47 : vector<8x128xf32>
    %49 = tpu.iota {dimensions = array<i32: 1>} : vector<8x128xi32>
    %c16_i32 = arith.constant 16 : i32
    %50 = vector.broadcast %c16_i32 : i32 to vector<8x128xi32>
    %51 = arith.cmpi eq, %49, %50 : vector<8x128xi32>
    %52 = arith.select %51, %36, %48 : vector<8x128xi1>, vector<8x128xf32>
    %c0_26 = arith.constant 0 : index
    %c0_27 = arith.constant 0 : index
    %53 = vector.load %arg9[%c0_26, %c0_27] : memref<8x128xf32, #tpu.memory_space<vmem>>, vector<8x128xf32>
    tpu.vector_store %arg9[%c0_26, %c0_27], %52 {strides = array<i32>} : memref<8x128xf32, #tpu.memory_space<vmem>>, vector<8x128xf32>,
    return
  }
  func.func @transform_0(%arg0: i32) -> (i32, i32) {
    %c0_i32 = arith.constant 0 : i32
    %c0_i32_0 = arith.constant 0 : i32
    return %arg0, %c0_i32 : i32, i32
  }
  func.func @transform_1(%arg0: i32) -> (i32, i32) {
    %c0_i32 = arith.constant 0 : i32
    %c0_i32_0 = arith.constant 0 : i32
    return %arg0, %c0_i32 : i32, i32
  }
  func.func @transform_2(%arg0: i32) -> (i32, i32) {
    %c0_i32 = arith.constant 0 : i32
    %c0_i32_0 = arith.constant 0 : i32
    %c0_i32_1 = arith.constant 0 : i32
    return %c0_i32, %c0_i32_0 : i32, i32
  }
  func.func @transform_3(%arg0: i32) -> (i32, i32) {
    %c0_i32 = arith.constant 0 : i32
    %c0_i32_0 = arith.constant 0 : i32
    %c0_i32_1 = arith.constant 0 : i32
    return %c0_i32, %c0_i32_0 : i32, i32
  }
  func.func @transform_4(%arg0: i32) -> (i32, i32) {
    %c0_i32 = arith.constant 0 : i32
    %c0_i32_0 = arith.constant 0 : i32
    %c0_i32_1 = arith.constant 0 : i32
    return %c0_i32, %c0_i32_0 : i32, i32
  }
  func.func @transform_5(%arg0: i32) -> (i32, i32) {
    %c0_i32 = arith.constant 0 : i32
    %c0_i32_0 = arith.constant 0 : i32
    %c0_i32_1 = arith.constant 0 : i32
    return %c0_i32, %c0_i32_0 : i32, i32
  }
  func.func @transform_6(%arg0: i32) -> (i32, i32) {
    %c0_i32 = arith.constant 0 : i32
    %c0_i32_0 = arith.constant 0 : i32
    %c0_i32_1 = arith.constant 0 : i32
    return %c0_i32, %c0_i32_0 : i32, i32
  }
  func.func @transform_7(%arg0: i32) -> (i32, i32) {
    %c0_i32 = arith.constant 0 : i32
    %c0_i32_0 = arith.constant 0 : i32
    %c0_i32_1 = arith.constant 0 : i32
    return %c0_i32, %c0_i32_0 : i32, i32
  }
  func.func @transform_8(%arg0: i32) -> (i32, i32) {
    %c0_i32 = arith.constant 0 : i32
    %c0_i32_0 = arith.constant 0 : i32
    return %arg0, %c0_i32 : i32, i32
  }
}

</mosaic_0001>

<llo_original>
// kernel: ffnetwork_forward.1
$region0: #{ffnetwork_forward.1}
  #allocation0 [shape = 'u32[]', space=smem, size = 0x4, offset = 0x4, fixed_abs, tag = 'smem constant byte address 0x4 - core index']
  #allocation1 [shape = 'u32[144,128]{1,0:T(1,128)}', space=vmem, size = 0x12000, scoped, tag = 'internal scratch']
  %s0 = inlined_call_operand.vmem [shape: f32[8,32], index: 0, kind: input, shape index: {}]
  %s1 = inlined_call_operand.vmem [shape: f32[8,128], index: 1, kind: input, shape index: {}]
  %s2 = inlined_call_operand.vmem [shape: f32[32,32], index: 2, kind: input, shape index: {}]
  %s3 = inlined_call_operand.hbm [shape: f32[32,32], index: 3, kind: input, shape index: {}]
  %s4 = inlined_call_operand.hbm [shape: f32[32,32], index: 4, kind: input, shape index: {}]
  %s5 = inlined_call_operand.hbm [shape: f32[32,128], index: 5, kind: input, shape index: {}]
  %s6 = inlined_call_operand.vmem [shape: f32[3,32], index: 6, kind: input, shape index: {}]
  %s7 = inlined_call_operand.vmem [shape: f32[1,128], index: 7, kind: input, shape index: {}]
  %s8 = inlined_call_operand.vmem [shape: f32[8,128], index: 8, kind: output, shape index: {}]
  %s9 = sld [smem:[#allocation0]]
  $region54: #{ffnetwork_forward.1} parent=0
    _
  %s11 = ssub.s32 1, %s9
  %s12 = scalar_select 0, %s11, %s9
  $region1: #{ffnetwork_forward.1} parent=0
    #allocation2 [shape = 'u8[16384]{0}', space=vmem, size = 0x4000, scoped, tag = 'input window, operand 3, single buffered']
    #allocation3 [shape = 's32[1]{0}', space=sflag, size = 0x4, scoped, tag = 'scoped memory for ffnetwork_forward.1']
    #allocation4 [shape = 'u8[16384]{0}', space=vmem, size = 0x4000, scoped, tag = 'input window, operand 4, single buffered']
    #allocation5 [shape = 's32[1]{0}', space=sflag, size = 0x4, scoped, tag = 'scoped memory for ffnetwork_forward.1']
    #allocation6 [shape = 'u8[16384]{0}', space=vmem, size = 0x4000, scoped, tag = 'input window, operand 5, single buffered']
    %13 = vsyncpa [#allocation3], 0
    %14 = vsyncpa [#allocation5], 0
    // Predicated region
    $region2: #{ffnetwork_forward.1} parent=1 // pred_check
      _
    $region3: #{ffnetwork_forward.1} parent=1 // pred_check_branch
      %16 = sbr.rel (0) target = $region5
    $region4: #{ffnetwork_forward.1} parent=1 // pred_region
      _
    $region5: #{ffnetwork_forward.1} parent=1 // pred_fallthru
      _
    // Predicated region
    $region6: #{ffnetwork_forward.1} parent=1 // pred_check
      _
    $region7: #{ffnetwork_forward.1} parent=1 // pred_check_branch
      %18 = sbr.rel (0) target = $region9
    $region8: #{ffnetwork_forward.1} parent=1 // pred_region
      _
    $region9: #{ffnetwork_forward.1} parent=1 // pred_fallthru
      _
    // Predicated region
    $region10: #{ffnetwork_forward.1} parent=1 // pred_check
      _
    $region11: #{ffnetwork_forward.1} parent=1 // pred_check_branch
      %20 = sbr.rel (0) target = $region13
    $region12: #{ffnetwork_forward.1} parent=1 // pred_region
      _
    $region13: #{ffnetwork_forward.1} parent=1 // pred_fallthru
      _
    // Predicated region
    $region14: #{ffnetwork_forward.1} parent=1 // pred_check
      _
    $region15: #{ffnetwork_forward.1} parent=1 // pred_check_branch
      %22 = sbr.rel (0) target = $region17
    $region16: #{ffnetwork_forward.1} parent=1 // pred_region
      %s24 = ssub.s32 512, 512
      %25 = vsyncadd [#allocation3], %s24
      %s26 = sshll.u32 [#allocation2], 4
      %s27 = int_to_ptr.vmem [resolvable:$true] %s26
      %32 = dma.hbm_to_vmem [thread:$0]  %s3, 512, %s27, [#allocation3], 128, 128, 8
    $region17: #{ffnetwork_forward.1} parent=1 // pred_fallthru
      _
    // Predicated region
    $region18: #{ffnetwork_forward.1} parent=1 // pred_check
      _
    $region19: #{ffnetwork_forward.1} parent=1 // pred_check_branch
      %34 = sbr.rel (0) target = $region21
    $region20: #{ffnetwork_forward.1} parent=1 // pred_region
      %s36 = ssub.s32 512, 512
      %37 = vsyncadd [#allocation5], %s36
      %s38 = sshll.u32 [#allocation4], 4
      %s39 = int_to_ptr.vmem [resolvable:$true] %s38
      %44 = dma.hbm_to_vmem [thread:$0]  %s4, 512, %s39, [#allocation5], 128, 128, 8
    $region21: #{ffnetwork_forward.1} parent=1 // pred_fallthru
      _
    // Predicated region
    $region22: #{ffnetwork_forward.1} parent=1 // pred_check
      _
    $region23: #{ffnetwork_forward.1} parent=1 // pred_check_branch
      %46 = sbr.rel (0) target = $region25
    $region24: #{ffnetwork_forward.1} parent=1 // pred_region
      %s48 = ssub.s32 512, 512
      %49 = vsyncadd [#allocation5], %s48
      %s50 = sshll.u32 [#allocation6], 4
      %s51 = int_to_ptr.vmem [resolvable:$true] %s50
      %56 = dma.hbm_to_vmem [thread:$0]  %s5, 512, %s51, [#allocation5], 128, 128, 8
    $region25: #{ffnetwork_forward.1} parent=1 // pred_fallthru
      _
    // Predicated region
    $region26: #{ffnetwork_forward.1} parent=1 // pred_check
      _
    $region27: #{ffnetwork_forward.1} parent=1 // pred_check_branch
      %58 = sbr.rel (0) target = $region29
    $region28: #{ffnetwork_forward.1} parent=1 // pred_region
      _
    $region29: #{ffnetwork_forward.1} parent=1 // pred_fallthru
      _
    // Predicated region
    $region30: #{ffnetwork_forward.1} parent=1 // pred_check
      _
    $region31: #{ffnetwork_forward.1} parent=1 // pred_check_branch
      %60 = sbr.rel (0) target = $region33
    $region32: #{ffnetwork_forward.1} parent=1 // pred_region
      _
    $region33: #{ffnetwork_forward.1} parent=1 // pred_fallthru
      _
    // Predicated region
    $region34: #{ffnetwork_forward.1} parent=1 // pred_check
      _
    $region35: #{ffnetwork_forward.1} parent=1 // pred_check_branch
      %62 = sbr.rel (0) target = $region37
    $region36: #{ffnetwork_forward.1} parent=1 // pred_region
      %63 = dma.done [#allocation3], 512
    $region37: #{ffnetwork_forward.1} parent=1 // pred_fallthru
      _
    // Predicated region
    $region38: #{ffnetwork_forward.1} parent=1 // pred_check
      _
    $region39: #{ffnetwork_forward.1} parent=1 // pred_check_branch
      %65 = sbr.rel (0) target = $region41
    $region40: #{ffnetwork_forward.1} parent=1 // pred_region
      %66 = dma.done [#allocation5], 512
    $region41: #{ffnetwork_forward.1} parent=1 // pred_fallthru
      _
    // Predicated region
    $region42: #{ffnetwork_forward.1} parent=1 // pred_check
      _
    $region43: #{ffnetwork_forward.1} parent=1 // pred_check_branch
      %68 = sbr.rel (0) target = $region45
    $region44: #{ffnetwork_forward.1} parent=1 // pred_region
      %69 = dma.done [#allocation5], 512
    $region45: #{ffnetwork_forward.1} parent=1 // pred_fallthru
      _
    %v70 = vld [vmem:[%s6] sm:$0x7]
    %v71 = vld [vmem:[%s0] sm:$0xff]
    %v72 = vld [vmem:[%s2] sm:$0xff]
    %v73 = vld [vmem:[%s2 + $0x8] sm:$0xff]
    %v74 = vld [vmem:[%s2 + $0x10] sm:$0xff]
    %v75 = vld [vmem:[%s2 + $0x18] sm:$0xff]
    %v76 = vlaneseq
    %v77 = vshrl.u32 %v76, 7
    %v78 = vsub.s32 0, %v77
    %v79 = vrot.slane %v70, %v78
    %vm80 = vcmask 261120
    %v82 = vsel %vm80, %v71, 0
    %84 = vmatprep.subr.mxu0 0.0
    %85 = vmatpush1.msra.mxu0 %v72
    %86 = vmatprep.subr.mxu0 0.0
    %87 = vmatpush1.msra.mxu0 %v73
    %88 = vmatprep.subr.mxu0 0.0
    %89 = vmatpush1.msra.mxu0 %v74
    %90 = vmatprep.subr.mxu0 0.0
    %91 = vmatpush1.msra.mxu0 %v75
    %92 = vmatprep.subr.mxu0 0.0
    %93 = vmatpush1.msra.mxu0 0.0
    %94 = vmatprep.subr.mxu0 0.0
    %95 = vmatpush1.msra.mxu0 0.0
    %96 = vmatprep.subr.mxu0 0.0
    %97 = vmatpush1.msra.mxu0 0.0
    %98 = vmatprep.subr.mxu0 0.0
    %99 = vmatpush1.msra.mxu0 0.0
    %100 = vmatprep.subr.mxu0 0.0
    %101 = vmatpush1.msra.mxu0 0.0
    %102 = vmatprep.subr.mxu0 0.0
    %103 = vmatpush1.msra.mxu0 0.0
    %104 = vmatprep.subr.mxu0 0.0
    %105 = vmatpush1.msra.mxu0 0.0
    %106 = vmatprep.subr.mxu0 0.0
    %107 = vmatpush1.msra.mxu0 0.0
    %108 = vmatprep.subr.mxu0 0.0
    %109 = vmatpush1.msra.mxu0 0.0
    %110 = vmatprep.subr.mxu0 0.0
    %111 = vmatpush1.msra.mxu0 0.0
    %112 = vmatprep.subr.mxu0 0.0
    %113 = vmatpush1.msra.mxu0 0.0
    %114 = vmatprep.subr.mxu0 0.0
    %115 = vmatpush1.msra.mxu0 0.0
    %116 = vmatprep.subr.mxu0 0.0
    %117 = vmatpush1.msra.mxu0 0.0
    %118 = vmatprep.subr.mxu0 0.0
    %119 = vmatpush1.msra.mxu0 0.0
    %120 = vmatprep.subr.mxu0 0.0
    %121 = vmatpush1.msra.mxu0 0.0
    %122 = vmatprep.subr.mxu0 0.0
    %123 = vmatpush1.msra.mxu0 0.0
    %124 = vmatprep.subr.mxu0 0.0
    %125 = vmatpush1.msra.mxu0 0.0
    %126 = vmatprep.subr.mxu0 0.0
    %127 = vmatpush1.msra.mxu0 0.0
    %128 = vmatprep.subr.mxu0 0.0
    %129 = vmatpush1.msra.mxu0 0.0
    %130 = vmatprep.subr.mxu0 0.0
    %131 = vmatpush1.msra.mxu0 0.0
    %132 = vmatprep.subr.mxu0 0.0
    %133 = vmatpush1.msra.mxu0 0.0
    %134 = vmatprep.subr.mxu0 0.0
    %135 = vmatpush1.msra.mxu0 0.0
    %136 = vmatprep.subr.mxu0 0.0
    %137 = vmatpush1.msra.mxu0 0.0
    %138 = vmatprep.subr.mxu0 0.0
    %139 = vmatpush1.msra.mxu0 0.0
    %140 = vmatprep.subr.mxu0 0.0
    %141 = vmatpush1.msra.mxu0 0.0
    %142 = vmatprep.subr.mxu0 0.0
    %143 = vmatpush1.msra.mxu0 0.0
    %144 = vmatprep.subr.mxu0 0.0
    %145 = vmatpush1.msra.mxu0 0.0
    %146 = vmatprep.subr.mxu0 0.0
    %147 = vmatpush1.msra.mxu0 0.0
    %148 = vmatprep.mubr.f32.mxu0 0.0
    %149 = vmatmul.mubr.f32.gmra.mrb[0].mxu0 %v82
    %v150 = vpop.f32.mrb[0].mxu0
    %v151 = vadd.f32 %v79, %v150
    %v152 = vpop.f32.mrb[0].mxu0
    %153 = vdwg.mxu0
    %vm154 = vcmp.gt.f32.partialorder %v151, 0.0
    %v155 = vmul.f32 %v151, 0.01
    %v156 = vsel %vm154, %v151, %v155
    %v157 = vld [vmem:[#allocation2] sm:$0xff]
    %v158 = vld [vmem:[#allocation2 + $0x8] sm:$0xff]
    %v159 = vld [vmem:[#allocation2 + $0x10] sm:$0xff]
    %v160 = vld [vmem:[#allocation2 + $0x18] sm:$0xff]
    %v161 = vlaneseq
    %v162 = vshrl.u32 %v161, 7
    %v163 = vsub.s32 1, %v162
    %v164 = vrot.slane %v70, %v163
    %v166 = vsel %vm80, %v156, 0
    %168 = vmatprep.subr.mxu0 0.0
    %169 = vmatpush1.msra.mxu0 %v157
    %170 = vmatprep.subr.mxu0 0.0
    %171 = vmatpush1.msra.mxu0 %v158
    %172 = vmatprep.subr.mxu0 0.0
    %173 = vmatpush1.msra.mxu0 %v159
    %174 = vmatprep.subr.mxu0 0.0
    %175 = vmatpush1.msra.mxu0 %v160
    %176 = vmatprep.subr.mxu0 0.0
    %177 = vmatpush1.msra.mxu0 0.0
    %178 = vmatprep.subr.mxu0 0.0
    %179 = vmatpush1.msra.mxu0 0.0
    %180 = vmatprep.subr.mxu0 0.0
    %181 = vmatpush1.msra.mxu0 0.0
    %182 = vmatprep.subr.mxu0 0.0
    %183 = vmatpush1.msra.mxu0 0.0
    %184 = vmatprep.subr.mxu0 0.0
    %185 = vmatpush1.msra.mxu0 0.0
    %186 = vmatprep.subr.mxu0 0.0
    %187 = vmatpush1.msra.mxu0 0.0
    %188 = vmatprep.subr.mxu0 0.0
    %189 = vmatpush1.msra.mxu0 0.0
    %190 = vmatprep.subr.mxu0 0.0
    %191 = vmatpush1.msra.mxu0 0.0
    %192 = vmatprep.subr.mxu0 0.0
    %193 = vmatpush1.msra.mxu0 0.0
    %194 = vmatprep.subr.mxu0 0.0
    %195 = vmatpush1.msra.mxu0 0.0
    %196 = vmatprep.subr.mxu0 0.0
    %197 = vmatpush1.msra.mxu0 0.0
    %198 = vmatprep.subr.mxu0 0.0
    %199 = vmatpush1.msra.mxu0 0.0
    %200 = vmatprep.subr.mxu0 0.0
    %201 = vmatpush1.msra.mxu0 0.0
    %202 = vmatprep.subr.mxu0 0.0
    %203 = vmatpush1.msra.mxu0 0.0
    %204 = vmatprep.subr.mxu0 0.0
    %205 = vmatpush1.msra.mxu0 0.0
    %206 = vmatprep.subr.mxu0 0.0
    %207 = vmatpush1.msra.mxu0 0.0
    %208 = vmatprep.subr.mxu0 0.0
    %209 = vmatpush1.msra.mxu0 0.0
    %210 = vmatprep.subr.mxu0 0.0
    %211 = vmatpush1.msra.mxu0 0.0
    %212 = vmatprep.subr.mxu0 0.0
    %213 = vmatpush1.msra.mxu0 0.0
    %214 = vmatprep.subr.mxu0 0.0
    %215 = vmatpush1.msra.mxu0 0.0
    %216 = vmatprep.subr.mxu0 0.0
    %217 = vmatpush1.msra.mxu0 0.0
    %218 = vmatprep.subr.mxu0 0.0
    %219 = vmatpush1.msra.mxu0 0.0
    %220 = vmatprep.subr.mxu0 0.0
    %221 = vmatpush1.msra.mxu0 0.0
    %222 = vmatprep.subr.mxu0 0.0
    %223 = vmatpush1.msra.mxu0 0.0
    %224 = vmatprep.subr.mxu0 0.0
    %225 = vmatpush1.msra.mxu0 0.0
    %226 = vmatprep.subr.mxu0 0.0
    %227 = vmatpush1.msra.mxu0 0.0
    %228 = vmatprep.subr.mxu0 0.0
    %229 = vmatpush1.msra.mxu0 0.0
    %230 = vmatprep.subr.mxu0 0.0
    %231 = vmatpush1.msra.mxu0 0.0
    %232 = vmatprep.mubr.f32.mxu0 0.0
    %233 = vmatmul.mubr.f32.gmra.mrb[0].mxu0 %v166
    %v234 = vpop.f32.mrb[0].mxu0
    %v235 = vadd.f32 %v164, %v234
    %v236 = vpop.f32.mrb[0].mxu0
    %237 = vdwg.mxu0
    %vm238 = vcmp.gt.f32.partialorder %v235, 0.0
    %v239 = vmul.f32 %v235, 0.01
    %v240 = vsel %vm238, %v235, %v239
    %v241 = vld [vmem:[#allocation4] sm:$0xff]
    %v242 = vld [vmem:[#allocation4 + $0x8] sm:$0xff]
    %v243 = vld [vmem:[#allocation4 + $0x10] sm:$0xff]
    %v244 = vld [vmem:[#allocation4 + $0x18] sm:$0xff]
    %v245 = vlaneseq
    %v246 = vshrl.u32 %v245, 7
    %v247 = vsub.s32 2, %v246
    %v248 = vrot.slane %v70, %v247
    %v250 = vsel %vm80, %v240, 0
    %252 = vmatprep.subr.mxu0 0.0
    %253 = vmatpush1.msra.mxu0 %v241
    %254 = vmatprep.subr.mxu0 0.0
    %255 = vmatpush1.msra.mxu0 %v242
    %256 = vmatprep.subr.mxu0 0.0
    %257 = vmatpush1.msra.mxu0 %v243
    %258 = vmatprep.subr.mxu0 0.0
    %259 = vmatpush1.msra.mxu0 %v244
    %260 = vmatprep.subr.mxu0 0.0
    %261 = vmatpush1.msra.mxu0 0.0
    %262 = vmatprep.subr.mxu0 0.0
    %263 = vmatpush1.msra.mxu0 0.0
    %264 = vmatprep.subr.mxu0 0.0
    %265 = vmatpush1.msra.mxu0 0.0
    %266 = vmatprep.subr.mxu0 0.0
    %267 = vmatpush1.msra.mxu0 0.0
    %268 = vmatprep.subr.mxu0 0.0
    %269 = vmatpush1.msra.mxu0 0.0
    %270 = vmatprep.subr.mxu0 0.0
    %271 = vmatpush1.msra.mxu0 0.0
    %272 = vmatprep.subr.mxu0 0.0
    %273 = vmatpush1.msra.mxu0 0.0
    %274 = vmatprep.subr.mxu0 0.0
    %275 = vmatpush1.msra.mxu0 0.0
    %276 = vmatprep.subr.mxu0 0.0
    %277 = vmatpush1.msra.mxu0 0.0
    %278 = vmatprep.subr.mxu0 0.0
    %279 = vmatpush1.msra.mxu0 0.0
    %280 = vmatprep.subr.mxu0 0.0
    %281 = vmatpush1.msra.mxu0 0.0
    %282 = vmatprep.subr.mxu0 0.0
    %283 = vmatpush1.msra.mxu0 0.0
    %284 = vmatprep.subr.mxu0 0.0
    %285 = vmatpush1.msra.mxu0 0.0
    %286 = vmatprep.subr.mxu0 0.0
    %287 = vmatpush1.msra.mxu0 0.0
    %288 = vmatprep.subr.mxu0 0.0
    %289 = vmatpush1.msra.mxu0 0.0
    %290 = vmatprep.subr.mxu0 0.0
    %291 = vmatpush1.msra.mxu0 0.0
    %292 = vmatprep.subr.mxu0 0.0
    %293 = vmatpush1.msra.mxu0 0.0
    %294 = vmatprep.subr.mxu0 0.0
    %295 = vmatpush1.msra.mxu0 0.0
    %296 = vmatprep.subr.mxu0 0.0
    %297 = vmatpush1.msra.mxu0 0.0
    %298 = vmatprep.subr.mxu0 0.0
    %299 = vmatpush1.msra.mxu0 0.0
    %300 = vmatprep.subr.mxu0 0.0
    %301 = vmatpush1.msra.mxu0 0.0
    %302 = vmatprep.subr.mxu0 0.0
    %303 = vmatpush1.msra.mxu0 0.0
    %304 = vmatprep.subr.mxu0 0.0
    %305 = vmatpush1.msra.mxu0 0.0
    %306 = vmatprep.subr.mxu0 0.0
    %307 = vmatpush1.msra.mxu0 0.0
    %308 = vmatprep.subr.mxu0 0.0
    %309 = vmatpush1.msra.mxu0 0.0
    %310 = vmatprep.subr.mxu0 0.0
    %311 = vmatpush1.msra.mxu0 0.0
    %312 = vmatprep.subr.mxu0 0.0
    %313 = vmatpush1.msra.mxu0 0.0
    %314 = vmatprep.subr.mxu0 0.0
    %315 = vmatpush1.msra.mxu0 0.0
    %316 = vmatprep.mubr.f32.mxu0 0.0
    %317 = vmatmul.mubr.f32.gmra.mrb[0].mxu0 %v250
    %v318 = vpop.f32.mrb[0].mxu0
    %v319 = vadd.f32 %v248, %v318
    %v320 = vpop.f32.mrb[0].mxu0
    %321 = vdwg.mxu0
    %vm322 = vcmp.gt.f32.partialorder %v319, 0.0
    %v323 = vmul.f32 %v319, 0.01
    %v324 = vsel %vm322, %v319, %v323
    %v325 = vld [vmem:[#allocation6] sm:$0xff]
    %v326 = vld [vmem:[#allocation6 + $0x8] sm:$0xff]
    %v327 = vld [vmem:[#allocation6 + $0x10] sm:$0xff]
    %v328 = vld [vmem:[#allocation6 + $0x18] sm:$0xff]
    %v329 = vld [vmem:[%s7] sm:$0x1]
    %v331 = vlaneseq
    %v332 = vshrl.u32 %v331, 7
    %v333 = vsub.s32 0, %v332
    %v334 = vrot.slane %v329, %v333
    %v337 = vsel %vm80, %v324, 0
    %339 = vmatprep.subr.mxu0 0.0
    %340 = vmatpush1.msra.mxu0 %v325
    %341 = vmatprep.subr.mxu0 0.0
    %342 = vmatpush1.msra.mxu0 %v326
    %343 = vmatprep.subr.mxu0 0.0
    %344 = vmatpush1.msra.mxu0 %v327
    %345 = vmatprep.subr.mxu0 0.0
    %346 = vmatpush1.msra.mxu0 %v328
    %347 = vmatprep.subr.mxu0 0.0
    %348 = vmatpush1.msra.mxu0 0.0
    %349 = vmatprep.subr.mxu0 0.0
    %350 = vmatpush1.msra.mxu0 0.0
    %351 = vmatprep.subr.mxu0 0.0
    %352 = vmatpush1.msra.mxu0 0.0
    %353 = vmatprep.subr.mxu0 0.0
    %354 = vmatpush1.msra.mxu0 0.0
    %355 = vmatprep.subr.mxu0 0.0
    %356 = vmatpush1.msra.mxu0 0.0
    %357 = vmatprep.subr.mxu0 0.0
    %358 = vmatpush1.msra.mxu0 0.0
    %359 = vmatprep.subr.mxu0 0.0
    %360 = vmatpush1.msra.mxu0 0.0
    %361 = vmatprep.subr.mxu0 0.0
    %362 = vmatpush1.msra.mxu0 0.0
    %363 = vmatprep.subr.mxu0 0.0
    %364 = vmatpush1.msra.mxu0 0.0
    %365 = vmatprep.subr.mxu0 0.0
    %366 = vmatpush1.msra.mxu0 0.0
    %367 = vmatprep.subr.mxu0 0.0
    %368 = vmatpush1.msra.mxu0 0.0
    %369 = vmatprep.subr.mxu0 0.0
    %370 = vmatpush1.msra.mxu0 0.0
    %371 = vmatprep.subr.mxu0 0.0
    %372 = vmatpush1.msra.mxu0 0.0
    %373 = vmatprep.subr.mxu0 0.0
    %374 = vmatpush1.msra.mxu0 0.0
    %375 = vmatprep.subr.mxu0 0.0
    %376 = vmatpush1.msra.mxu0 0.0
    %377 = vmatprep.subr.mxu0 0.0
    %378 = vmatpush1.msra.mxu0 0.0
    %379 = vmatprep.subr.mxu0 0.0
    %380 = vmatpush1.msra.mxu0 0.0
    %381 = vmatprep.subr.mxu0 0.0
    %382 = vmatpush1.msra.mxu0 0.0
    %383 = vmatprep.subr.mxu0 0.0
    %384 = vmatpush1.msra.mxu0 0.0
    %385 = vmatprep.subr.mxu0 0.0
    %386 = vmatpush1.msra.mxu0 0.0
    %387 = vmatprep.subr.mxu0 0.0
    %388 = vmatpush1.msra.mxu0 0.0
    %389 = vmatprep.subr.mxu0 0.0
    %390 = vmatpush1.msra.mxu0 0.0
    %391 = vmatprep.subr.mxu0 0.0
    %392 = vmatpush1.msra.mxu0 0.0
    %393 = vmatprep.subr.mxu0 0.0
    %394 = vmatpush1.msra.mxu0 0.0
    %395 = vmatprep.subr.mxu0 0.0
    %396 = vmatpush1.msra.mxu0 0.0
    %397 = vmatprep.subr.mxu0 0.0
    %398 = vmatpush1.msra.mxu0 0.0
    %399 = vmatprep.subr.mxu0 0.0
    %400 = vmatpush1.msra.mxu0 0.0
    %401 = vmatprep.subr.mxu0 0.0
    %402 = vmatpush1.msra.mxu0 0.0
    %403 = vmatprep.mubr.f32.mxu0 0.0
    %404 = vmatmul.mubr.f32.gmra.mrb[0].mxu0 %v337
    %v405 = vpop.f32.mrb[0].mxu0
    %v406 = vadd.f32 %v334, %v405
    %v407 = vpop.f32.mrb[0].mxu0
    %408 = vdwg.mxu0
    %v409 = vld [vmem:[%s1] sm:$0xff]
    %v410 = vadd.f32 %v406, %v409
    %411 = vmax.xlane.f32.xlu0 %v410
    %v412 = vpop.xlane.xlu0 %411
    %v413 = vsub.f32 %v410, %v412
    %v414 = vmul.f32 %v413, 1.442695
    %v415 = vpow.pop %v414
    %416 = vadd.xlane.f32.xlu0 %v415
    %v417 = vpop.xlane.xlu0 %416
    %v418 = vrcp.pop %v417
    %v419 = vmul.f32 %v415, %v418
    %v420 = vlaneseq
    %v421 = vand.u32 %v420, 127
    %vm422 = vcmp.eq.s32.totalorder %v421, 16
    %v423 = vsel %vm422, %v406, %v419
    %424 = vst [vmem:[%s8] sm:$0xff] %v423
    // Predicated region
    $region46: #{ffnetwork_forward.1} parent=1 // pred_check
      _
    $region47: #{ffnetwork_forward.1} parent=1 // pred_check_branch
      %426 = sbr.rel (0) target = $region49
    $region48: #{ffnetwork_forward.1} parent=1 // pred_region
      _
    $region49: #{ffnetwork_forward.1} parent=1 // pred_fallthru
      _
    // Predicated region
    $region50: #{ffnetwork_forward.1} parent=1 // pred_check
      _
    $region51: #{ffnetwork_forward.1} parent=1 // pred_check_branch
      %428 = sbr.rel (0) target = $region53
    $region52: #{ffnetwork_forward.1} parent=1 // pred_region
      _
    $region53: #{ffnetwork_forward.1} parent=1 // pred_fallthru
      _
    %429 = vsyncpa [#allocation3], 1
    %430 = vsyncpa [#allocation5], 1

</llo_original>
